<compile_context>
chip_gen: v5e
topology: v5e:2x2
jax: 0.10.0
libtpu: 0.0.40
codegen_flags: <defaults>
</compile_context>

<pallas_src>
import functools

import jax
import jax.numpy as jnp
from jax.experimental import pallas as pl
from jax.experimental.pallas import tpu as pltpu


# ----------------------------------------------------------------------------
# Fused kernel: one-hot embedding gather + L-layer LSTM step + fc
# ----------------------------------------------------------------------------
def _decoder_kernel(num_layers, tok_ref, emb_ref, h_in_ref, c_in_ref, *refs):
    """Ref layout:

    tok_ref   : (N, 1)  int32 token ids
    emb_ref   : (V_in, E) bf16 embedding table (whole table in VMEM)
    h_in_ref  : (L, N, H) f32 previous hidden state (PyTorch layout)
    c_in_ref  : (L, N, H) f32 previous cell state
    refs      : per layer  w_ih_t (Din, 4H) bf16, w_hh_t (H, 4H) bf16,
                           b (1, 4H) f32 (= b_ih + b_hh, gate order i,f,o,g)
                then       fc_w_t (H, V) bf16, fc_b (1, V) f32
                outputs    preds (N, V) f32, h_out (N, L*H) f32,
                           c_out (N, L*H) f32
    """
    n_lstm = 3 * num_layers
    lstm_refs = refs[:n_lstm]
    fc_w_ref, fc_b_ref = refs[n_lstm], refs[n_lstm + 1]
    preds_ref, h_out_ref, c_out_ref = refs[n_lstm + 2:n_lstm + 5]

    N = tok_ref.shape[0]
    V_in = emb_ref.shape[0]
    H = h_in_ref.shape[2]
    mxu_dtype = emb_ref.dtype                       # bf16

    # ---- embedding gather as a one-hot MXU matmul ---------------------------
    tok = tok_ref[...]                               # (N, 1) int32
    col = jax.lax.broadcasted_iota(jnp.int32, (N, V_in), 1)
    onehot = (col == tok).astype(mxu_dtype)          # (N, V_in)
    x = jnp.dot(onehot, emb_ref[...],
                preferred_element_type=jnp.float32)  # (N, E) == gathered rows

    # Dropout(embedding) is identity in eval mode.
    x_mm = x.astype(mxu_dtype)

    # ---- L stacked LSTM cells (one time step) --------------------------------
    for l in range(num_layers):
        w_ih_ref = lstm_refs[3 * l]                  # (Din, 4H) bf16
        w_hh_ref = lstm_refs[3 * l + 1]              # (H,   4H) bf16
        b_ref = lstm_refs[3 * l + 2]                 # (1,   4H) f32

        h_prev = h_in_ref[l]                         # (N, H) f32
        c_prev = c_in_ref[l]                         # (N, H) f32

        gates = (jnp.dot(x_mm, w_ih_ref[...],
                         preferred_element_type=jnp.float32)
                 + jnp.dot(h_prev.astype(mxu_dtype), w_hh_ref[...],
                           preferred_element_type=jnp.float32)
                 + b_ref[...])                       # (N, 4H) f32

        # Gate order (param-build time) is [i, f, o, g]:
        # one sigmoid over the first 3H lanes, one tanh over the last H.
        sig = jax.nn.sigmoid(gates[:, :3 * H])
        g_g = jnp.tanh(gates[:, 3 * H:])
        i_g = sig[:, 0 * H:1 * H]
        f_g = sig[:, 1 * H:2 * H]
        o_g = sig[:, 2 * H:3 * H]

        c_l = f_g * c_prev + i_g * g_g
        h_l = o_g * jnp.tanh(c_l)

        # Write straight into the lane-dense output slabs.
        h_out_ref[:, l * H:(l + 1) * H] = h_l
        c_out_ref[:, l * H:(l + 1) * H] = c_l

        x_mm = h_l.astype(mxu_dtype)                 # inter-layer dropout = id

    # ---- fc: predictions over the vocab --------------------------------------
    preds_ref[...] = (jnp.dot(x_mm, fc_w_ref[...],
                              preferred_element_type=jnp.float32)
                      + fc_b_ref[...])


# ----------------------------------------------------------------------------
# Wrapper: one fused, gridless pallas_call; PyTorch-compatible in/out layout
# ----------------------------------------------------------------------------
def decoder_forward(params, x_tokens, hidden, cell):
    """Mirrors Decoder.forward:
        x -> unsqueeze(0) -> embedding -> dropout(eval) -> LSTM step -> fc
    Returns (predictions (N, V), hidden (L, N, H), cell (L, N, H)).
    """
    L, N, H = hidden.shape
    V = params["fc_w_t"].shape[1]

    tok2d = x_tokens.reshape(N, 1).astype(jnp.int32)

    args = [tok2d, params["embedding"], hidden, cell]
    for lp in params["lstm"]:
        args += [lp["w_ih_t"], lp["w_hh_t"], lp["b"]]
    args += [params["fc_w_t"], params["fc_b"]]

    vmem = pl.BlockSpec(memory_space=pltpu.MemorySpace.VMEM)

    out_shape = (
        jax.ShapeDtypeStruct((N, V), jnp.float32),
        jax.ShapeDtypeStruct((N, L * H), jnp.float32),
        jax.ShapeDtypeStruct((N, L * H), jnp.float32),
    )

    preds, h_slab, c_slab = pl.pallas_call(
        functools.partial(_decoder_kernel, L),
        out_shape=out_shape,
        in_specs=[vmem] * len(args),
        out_specs=(vmem, vmem, vmem),
    )(*args)

    # Layout plumbing: lane-dense (N, L*H) slab -> PyTorch (L, N, H).
    new_hidden = h_slab.reshape(N, L, H).transpose(1, 0, 2)
    new_cell = c_slab.reshape(N, L, H).transpose(1, 0, 2)
    return preds, new_hidden, new_cell


# ----------------------------------------------------------------------------
# Deterministic parameter construction
# ----------------------------------------------------------------------------
def _reorder_gates(w):
    """Reorder leading gate axis from PyTorch [i, f, g, o] -> [i, f, o, g]."""
    h4 = w.shape[0]
    h = h4 // 4
    return jnp.concatenate([w[:2 * h], w[3 * h:], w[2 * h:3 * h]], axis=0)


def make_params(key, input_size, embedding_size, hidden_size, output_size,
                num_layers):
    keys = jax.random.split(key, 4 + 4 * num_layers)
    ki = iter(keys)
    scale = 0.1

    params = {
        "embedding": (scale * jax.random.normal(
            next(ki), (input_size, embedding_size), jnp.float32)
        ).astype(jnp.bfloat16),
        "lstm": [],
        # fc: Linear(hidden_size, output_size); store W^T for the kernel.
        "fc_w_t": (scale * jax.random.normal(
            next(ki), (hidden_size, output_size), jnp.float32)
        ).astype(jnp.bfloat16),
        "fc_b": scale * jax.random.normal(
            next(ki), (1, output_size), jnp.float32),
    }
    for l in range(num_layers):
        d_in = embedding_size if l == 0 else hidden_size
        w_ih = scale * jax.random.normal(
            next(ki), (4 * hidden_size, d_in), jnp.float32)
        w_hh = scale * jax.random.normal(
            next(ki), (4 * hidden_size, hidden_size), jnp.float32)
        b_ih = scale * jax.random.normal(
            next(ki), (4 * hidden_size,), jnp.float32)
        b_hh = scale * jax.random.normal(
            next(ki), (4 * hidden_size,), jnp.float32)
        params["lstm"].append({
            # Transposed, gate-reordered [i,f,o,g], bf16 for the MXU.
            "w_ih_t": _reorder_gates(w_ih).T.astype(jnp.bfloat16),  # (d_in,4H)
            "w_hh_t": _reorder_gates(w_hh).T.astype(jnp.bfloat16),  # (H,  4H)
            # Folded bias, kept in f32.
            "b": (_reorder_gates(b_ih) + _reorder_gates(b_hh))[None, :],
        })
    return params


# ----------------------------------------------------------------------------
# Pure-JAX reference (same bf16 weights, f32 math) for a sanity check
# ----------------------------------------------------------------------------
def decoder_reference(params, x_tokens, hidden, cell):
    L, N, H = hidden.shape
    emb = params["embedding"].astype(jnp.float32)
    x = emb[x_tokens]                                    # (N, E)
    h_new, c_new = [], []
    for l in range(L):
        lp = params["lstm"][l]
        w_ih_t = lp["w_ih_t"].astype(jnp.float32)
        w_hh_t = lp["w_hh_t"].astype(jnp.float32)
        gates = x @ w_ih_t + hidden[l] @ w_hh_t + lp["b"]
        sig = jax.nn.sigmoid(gates[:, :3 * H])
        g = jnp.tanh(gates[:, 3 * H:])
        i, f, o = sig[:, :H], sig[:, H:2 * H], sig[:, 2 * H:3 * H]
        c_l = f * cell[l] + i * g
        h_l = o * jnp.tanh(c_l)
        h_new.append(h_l)
        c_new.append(c_l)
        x = h_l
    preds = x @ params["fc_w_t"].astype(jnp.float32) + params["fc_b"]
    return preds, jnp.stack(h_new), jnp.stack(c_new)


# ----------------------------------------------------------------------------
if __name__ == "__main__":
    # Small shapes consistent with the module.
    input_size = 128      # decoder vocab (= len(english.vocab) stand-in)
    embedding_size = 32
    hidden_size = 64
    output_size = 128
    num_layers = 2
    N = 8                 # batch size

    key = jax.random.PRNGKey(0)
    kp, kx, kh, kc = jax.random.split(key, 4)

    params = make_params(kp, input_size, embedding_size, hidden_size,
                         output_size, num_layers)

    x_tokens = jax.random.randint(kx, (N,), 0, input_size, dtype=jnp.int32)
    hidden = jax.random.normal(kh, (num_layers, N, hidden_size), jnp.float32)
    cell = jax.random.normal(kc, (num_layers, N, hidden_size), jnp.float32)

    preds, new_hidden, new_cell = decoder_forward(params, x_tokens, hidden,
                                                  cell)
    jax.block_until_ready((preds, new_hidden, new_cell))

    assert preds.shape == (N, output_size)
    assert new_hidden.shape == (num_layers, N, hidden_size)
    assert new_cell.shape == (num_layers, N, hidden_size)
    assert bool(jnp.all(jnp.isfinite(preds)))

    # Loose check against the f32 reference (bf16 MXU inputs -> small error).
    ref_p, ref_h, ref_c = decoder_reference(params, x_tokens, hidden, cell)
    assert bool(jnp.max(jnp.abs(preds - ref_p)) < 1e-1)
    assert bool(jnp.max(jnp.abs(new_hidden - ref_h)) < 1e-1)
    assert bool(jnp.max(jnp.abs(new_cell - ref_c)) < 1e-1)

    print("KERNEL_OK")
</pallas_src>

<mosaic_0001>
module attributes {stable_mosaic.version = 11 : i64} {
  func.func @_decoder_kernel(%arg0: memref<8x1xi32, #tpu.memory_space<vmem>>, %arg1: memref<128x32xbf16, #tpu.memory_space<vmem>>, %arg2: memref<2x8x64xf32, #tpu.memory_space<vmem>>, %arg3: memref<2x8x64xf32, #tpu.memory_space<vmem>>, %arg4: memref<32x256xbf16, #tpu.memory_space<vmem>>, %arg5: memref<64x256xbf16, #tpu.memory_space<vmem>>, %arg6: memref<1x256xf32, #tpu.memory_space<vmem>>, %arg7: memref<64x256xbf16, #tpu.memory_space<vmem>>, %arg8: memref<64x256xbf16, #tpu.memory_space<vmem>>, %arg9: memref<1x256xf32, #tpu.memory_space<vmem>>, %arg10: memref<64x128xbf16, #tpu.memory_space<vmem>>, %arg11: memref<1x128xf32, #tpu.memory_space<vmem>>, %arg12: memref<8x128xf32, #tpu.memory_space<vmem>>, %arg13: memref<8x128xf32, #tpu.memory_space<vmem>>, %arg14: memref<8x128xf32, #tpu.memory_space<vmem>>) attributes {dimension_semantics = [], scalar_prefetch = 0 : i64, scratch_operands = 0 : i64, tpu.core_type = #tpu.core_type<tc>} {
    %c0 = arith.constant 0 : index
    %c0_0 = arith.constant 0 : index
    %0 = vector.load %arg0[%c0, %c0_0] : memref<8x1xi32, #tpu.memory_space<vmem>>, vector<8x1xi32>
    %1 = tpu.iota {dimensions = array<i32: 1>} : vector<8x128xi32>
    %2 = vector.broadcast %0 : vector<8x1xi32> to vector<8x128xi32>
    %3 = arith.cmpi eq, %1, %2 : vector<8x128xi32>
    %4 = arith.extui %3 : vector<8x128xi1> to vector<8x128xi32>
    %5 = arith.sitofp %4 : vector<8x128xi32> to vector<8x128xf32>
    %6 = arith.truncf %5 : vector<8x128xf32> to vector<8x128xbf16>
    %c0_1 = arith.constant 0 : index
    %c0_2 = arith.constant 0 : index
    %7 = vector.load %arg1[%c0_1, %c0_2] : memref<128x32xbf16, #tpu.memory_space<vmem>>, vector<128x32xbf16>
    %cst = arith.constant dense<0.000000e+00> : vector<8x32xf32>
    %8 = tpu.matmul %6, %7, %cst {dimension_numbers = #tpu.dot_dimension_numbers<[1], [0], [0], [1], [0, 0, 1, 1], [], []>} : vector<8x128xbf16>, vector<128x32xbf16>, vector<8x32xf32> -> vector<8x32xf32>
    %9 = arith.truncf %8 : vector<8x32xf32> to vector<8x32xbf16>
    %c0_3 = arith.constant 0 : index
    %c0_4 = arith.constant 0 : index
    %c0_5 = arith.constant 0 : index
    %10 = vector.load %arg2[%c0_3, %c0_4, %c0_5] : memref<2x8x64xf32, #tpu.memory_space<vmem>>, vector<1x8x64xf32>
    %11 = vector.shape_cast %10 : vector<1x8x64xf32> to vector<8x64xf32>
    %c0_6 = arith.constant 0 : index
    %c0_7 = arith.constant 0 : index
    %c0_8 = arith.constant 0 : index
    %12 = vector.load %arg3[%c0_6, %c0_7, %c0_8] : memref<2x8x64xf32, #tpu.memory_space<vmem>>, vector<1x8x64xf32>
    %13 = vector.shape_cast %12 : vector<1x8x64xf32> to vector<8x64xf32>
    %c0_9 = arith.constant 0 : index
    %c0_10 = arith.constant 0 : index
    %14 = vector.load %arg4[%c0_9, %c0_10] : memref<32x256xbf16, #tpu.memory_space<vmem>>, vector<32x256xbf16>
    %cst_11 = arith.constant dense<0.000000e+00> : vector<8x256xf32>
    %15 = tpu.matmul %9, %14, %cst_11 {dimension_numbers = #tpu.dot_dimension_numbers<[1], [0], [0], [1], [0, 0, 1, 1], [], []>} : vector<8x32xbf16>, vector<32x256xbf16>, vector<8x256xf32> -> vector<8x256xf32>
    %16 = arith.truncf %11 : vector<8x64xf32> to vector<8x64xbf16>
    %c0_12 = arith.constant 0 : index
    %c0_13 = arith.constant 0 : index
    %17 = vector.load %arg5[%c0_12, %c0_13] : memref<64x256xbf16, #tpu.memory_space<vmem>>, vector<64x256xbf16>
    %cst_14 = arith.constant dense<0.000000e+00> : vector<8x256xf32>
    %18 = tpu.matmul %16, %17, %cst_14 {dimension_numbers = #tpu.dot_dimension_numbers<[1], [0], [0], [1], [0, 0, 1, 1], [], []>} : vector<8x64xbf16>, vector<64x256xbf16>, vector<8x256xf32> -> vector<8x256xf32>
    %19 = arith.addf %15, %18 : vector<8x256xf32>
    %c0_15 = arith.constant 0 : index
    %c0_16 = arith.constant 0 : index
    %20 = vector.load %arg6[%c0_15, %c0_16] : memref<1x256xf32, #tpu.memory_space<vmem>>, vector<1x256xf32>
    %21 = vector.broadcast %20 : vector<1x256xf32> to vector<8x256xf32>
    %22 = arith.addf %19, %21 : vector<8x256xf32>
    %23 = vector.extract_strided_slice %22 {offsets = [0, 0], sizes = [8, 192], strides = [1, 1]} : vector<8x256xf32> to vector<8x192xf32>
    %24 = arith.negf %23 : vector<8x192xf32>
    %25 = math.exp %24 : vector<8x192xf32>
    %cst_17 = arith.constant 1.000000e+00 : f32
    %26 = vector.broadcast %cst_17 : f32 to vector<8x192xf32>
    %27 = arith.addf %26, %25 : vector<8x192xf32>
    %28 = arith.divf %26, %27 : vector<8x192xf32>
    %29 = vector.extract_strided_slice %22 {offsets = [0, 192], sizes = [8, 64], strides = [1, 1]} : vector<8x256xf32> to vector<8x64xf32>
    %30 = math.tanh %29 : vector<8x64xf32>
    %31 = vector.extract_strided_slice %28 {offsets = [0, 0], sizes = [8, 64], strides = [1, 1]} : vector<8x192xf32> to vector<8x64xf32>
    %32 = vector.extract_strided_slice %28 {offsets = [0, 64], sizes = [8, 64], strides = [1, 1]} : vector<8x192xf32> to vector<8x64xf32>
    %33 = vector.extract_strided_slice %28 {offsets = [0, 128], sizes = [8, 64], strides = [1, 1]} : vector<8x192xf32> to vector<8x64xf32>
    %34 = arith.mulf %32, %13 : vector<8x64xf32>
    %35 = arith.mulf %31, %30 : vector<8x64xf32>
    %36 = arith.addf %34, %35 : vector<8x64xf32>
    %37 = math.tanh %36 : vector<8x64xf32>
    %38 = arith.mulf %33, %37 : vector<8x64xf32>
    %c0_18 = arith.constant 0 : index
    %c0_19 = arith.constant 0 : index
    %39 = vector.load %arg13[%c0_18, %c0_19] : memref<8x128xf32, #tpu.memory_space<vmem>>, vector<8x64xf32>
    tpu.vector_store %arg13[%c0_18, %c0_19], %38 {strides = array<i32>} : memref<8x128xf32, #tpu.memory_space<vmem>>, vector<8x64xf32>,
    %c0_20 = arith.constant 0 : index
    %c0_21 = arith.constant 0 : index
    %40 = vector.load %arg14[%c0_20, %c0_21] : memref<8x128xf32, #tpu.memory_space<vmem>>, vector<8x64xf32>
    tpu.vector_store %arg14[%c0_20, %c0_21], %36 {strides = array<i32>} : memref<8x128xf32, #tpu.memory_space<vmem>>, vector<8x64xf32>,
    %41 = arith.truncf %38 : vector<8x64xf32> to vector<8x64xbf16>
    %c1 = arith.constant 1 : index
    %c0_22 = arith.constant 0 : index
    %c0_23 = arith.constant 0 : index
    %42 = vector.load %arg2[%c1, %c0_22, %c0_23] : memref<2x8x64xf32, #tpu.memory_space<vmem>>, vector<1x8x64xf32>
    %43 = vector.shape_cast %42 : vector<1x8x64xf32> to vector<8x64xf32>
    %c1_24 = arith.constant 1 : index
    %c0_25 = arith.constant 0 : index
    %c0_26 = arith.constant 0 : index
    %44 = vector.load %arg3[%c1_24, %c0_25, %c0_26] : memref<2x8x64xf32, #tpu.memory_space<vmem>>, vector<1x8x64xf32>
    %45 = vector.shape_cast %44 : vector<1x8x64xf32> to vector<8x64xf32>
    %c0_27 = arith.constant 0 : index
    %c0_28 = arith.constant 0 : index
    %46 = vector.load %arg7[%c0_27, %c0_28] : memref<64x256xbf16, #tpu.memory_space<vmem>>, vector<64x256xbf16>
    %cst_29 = arith.constant dense<0.000000e+00> : vector<8x256xf32>
    %47 = tpu.matmul %41, %46, %cst_29 {dimension_numbers = #tpu.dot_dimension_numbers<[1], [0], [0], [1], [0, 0, 1, 1], [], []>} : vector<8x64xbf16>, vector<64x256xbf16>, vector<8x256xf32> -> vector<8x256xf32>
    %48 = arith.truncf %43 : vector<8x64xf32> to vector<8x64xbf16>
    %c0_30 = arith.constant 0 : index
    %c0_31 = arith.constant 0 : index
    %49 = vector.load %arg8[%c0_30, %c0_31] : memref<64x256xbf16, #tpu.memory_space<vmem>>, vector<64x256xbf16>
    %cst_32 = arith.constant dense<0.000000e+00> : vector<8x256xf32>
    %50 = tpu.matmul %48, %49, %cst_32 {dimension_numbers = #tpu.dot_dimension_numbers<[1], [0], [0], [1], [0, 0, 1, 1], [], []>} : vector<8x64xbf16>, vector<64x256xbf16>, vector<8x256xf32> -> vector<8x256xf32>
    %51 = arith.addf %47, %50 : vector<8x256xf32>
    %c0_33 = arith.constant 0 : index
    %c0_34 = arith.constant 0 : index
    %52 = vector.load %arg9[%c0_33, %c0_34] : memref<1x256xf32, #tpu.memory_space<vmem>>, vector<1x256xf32>
    %53 = vector.broadcast %52 : vector<1x256xf32> to vector<8x256xf32>
    %54 = arith.addf %51, %53 : vector<8x256xf32>
    %55 = vector.extract_strided_slice %54 {offsets = [0, 0], sizes = [8, 192], strides = [1, 1]} : vector<8x256xf32> to vector<8x192xf32>
    %56 = arith.negf %55 : vector<8x192xf32>
    %57 = math.exp %56 : vector<8x192xf32>
    %cst_35 = arith.constant 1.000000e+00 : f32
    %58 = vector.broadcast %cst_35 : f32 to vector<8x192xf32>
    %59 = arith.addf %58, %57 : vector<8x192xf32>
    %60 = arith.divf %58, %59 : vector<8x192xf32>
    %61 = vector.extract_strided_slice %54 {offsets = [0, 192], sizes = [8, 64], strides = [1, 1]} : vector<8x256xf32> to vector<8x64xf32>
    %62 = math.tanh %61 : vector<8x64xf32>
    %63 = vector.extract_strided_slice %60 {offsets = [0, 0], sizes = [8, 64], strides = [1, 1]} : vector<8x192xf32> to vector<8x64xf32>
    %64 = vector.extract_strided_slice %60 {offsets = [0, 64], sizes = [8, 64], strides = [1, 1]} : vector<8x192xf32> to vector<8x64xf32>
    %65 = vector.extract_strided_slice %60 {offsets = [0, 128], sizes = [8, 64], strides = [1, 1]} : vector<8x192xf32> to vector<8x64xf32>
    %66 = arith.mulf %64, %45 : vector<8x64xf32>
    %67 = arith.mulf %63, %62 : vector<8x64xf32>
    %68 = arith.addf %66, %67 : vector<8x64xf32>
    %69 = math.tanh %68 : vector<8x64xf32>
    %70 = arith.mulf %65, %69 : vector<8x64xf32>
    %c0_36 = arith.constant 0 : index
    %c64 = arith.constant 64 : index
    %71 = vector.load %arg13[%c0_36, %c64] : memref<8x128xf32, #tpu.memory_space<vmem>>, vector<8x64xf32>
    tpu.vector_store %arg13[%c0_36, %c64], %70 {strides = array<i32>} : memref<8x128xf32, #tpu.memory_space<vmem>>, vector<8x64xf32>,
    %c0_37 = arith.constant 0 : index
    %c64_38 = arith.constant 64 : index
    %72 = vector.load %arg14[%c0_37, %c64_38] : memref<8x128xf32, #tpu.memory_space<vmem>>, vector<8x64xf32>
    tpu.vector_store %arg14[%c0_37, %c64_38], %68 {strides = array<i32>} : memref<8x128xf32, #tpu.memory_space<vmem>>, vector<8x64xf32>,
    %73 = arith.truncf %70 : vector<8x64xf32> to vector<8x64xbf16>
    %c0_39 = arith.constant 0 : index
    %c0_40 = arith.constant 0 : index
    %74 = vector.load %arg10[%c0_39, %c0_40] : memref<64x128xbf16, #tpu.memory_space<vmem>>, vector<64x128xbf16>
    %cst_41 = arith.constant dense<0.000000e+00> : vector<8x128xf32>
    %75 = tpu.matmul %73, %74, %cst_41 {dimension_numbers = #tpu.dot_dimension_numbers<[1], [0], [0], [1], [0, 0, 1, 1], [], []>} : vector<8x64xbf16>, vector<64x128xbf16>, vector<8x128xf32> -> vector<8x128xf32>
    %c0_42 = arith.constant 0 : index
    %c0_43 = arith.constant 0 : index
    %76 = vector.load %arg11[%c0_42, %c0_43] : memref<1x128xf32, #tpu.memory_space<vmem>>, vector<1x128xf32>
    %77 = vector.broadcast %76 : vector<1x128xf32> to vector<8x128xf32>
    %78 = arith.addf %75, %77 : vector<8x128xf32>
    %c0_44 = arith.constant 0 : index
    %c0_45 = arith.constant 0 : index
    %79 = vector.load %arg12[%c0_44, %c0_45] : memref<8x128xf32, #tpu.memory_space<vmem>>, vector<8x128xf32>
    tpu.vector_store %arg12[%c0_44, %c0_45], %78 {strides = array<i32>} : memref<8x128xf32, #tpu.memory_space<vmem>>, vector<8x128xf32>,
    return
  }
}

</mosaic_0001>

<llo_original>
// kernel: tpu_custom_call.1
$region0: #{tpu_custom_call.1}
  #allocation0 [shape = 'u32[]', space=smem, size = 0x4, offset = 0x4, fixed_abs, tag = 'smem constant byte address 0x4 - core index']
  #allocation1 [shape = 'u32[72,128]{1,0:T(1,128)}', space=vmem, size = 0x9000, scoped, tag = 'internal scratch']
  %s0 = inlined_call_operand.vmem [shape: s32[8,1], index: 0, kind: input, shape index: {}]
  %s1 = inlined_call_operand.vmem [shape: bf16[128,32], index: 1, kind: input, shape index: {}]
  %s2 = inlined_call_operand.hbm [shape: f32[2,8,64], index: 2, kind: input, shape index: {}]
  %s3 = inlined_call_operand.hbm [shape: f32[2,8,64], index: 3, kind: input, shape index: {}]
  %s4 = inlined_call_operand.hbm [shape: bf16[32,256], index: 4, kind: input, shape index: {}]
  %s5 = inlined_call_operand.vmem [shape: bf16[64,256], index: 5, kind: input, shape index: {}]
  %s6 = inlined_call_operand.hbm [shape: f32[1,256], index: 6, kind: input, shape index: {}]
  %s7 = inlined_call_operand.hbm [shape: bf16[64,256], index: 7, kind: input, shape index: {}]
  %s8 = inlined_call_operand.hbm [shape: bf16[64,256], index: 8, kind: input, shape index: {}]
  %s9 = inlined_call_operand.hbm [shape: f32[1,256], index: 9, kind: input, shape index: {}]
  %s10 = inlined_call_operand.vmem [shape: bf16[64,128], index: 10, kind: input, shape index: {}]
  %s11 = inlined_call_operand.vmem [shape: f32[1,128], index: 11, kind: input, shape index: {}]
  %s12 = inlined_call_operand.hbm [shape: f32[8,128], index: 12, kind: output, shape index: {0}]
  %s13 = inlined_call_operand.hbm [shape: f32[8,128], index: 13, kind: output, shape index: {1}]
  %s14 = inlined_call_operand.hbm [shape: f32[8,128], index: 14, kind: output, shape index: {2}]
  %15 = xla_tuple %s12, %s13, %s14
  %s16 = sld [smem:[#allocation0]]
  $region102: #{tpu_custom_call.1} parent=0
    _
  %s18 = ssub.s32 1, %s16
  %s19 = scalar_select 0, %s18, %s16
  $region1: #{tpu_custom_call.1} parent=0
    #allocation2 [shape = 'u8[8192]{0}', space=vmem, size = 0x2000, scoped, tag = 'input window, operand 2, single buffered']
    #allocation3 [shape = 's32[1]{0}', space=sflag, size = 0x4, scoped, tag = 'scoped memory for tpu_custom_call.1']
    #allocation4 [shape = 's32[1]{0}', space=sflag, size = 0x4, scoped, tag = 'scoped memory for tpu_custom_call.1']
    #allocation5 [shape = 'u8[8192]{0}', space=vmem, size = 0x2000, scoped, tag = 'input window, operand 3, single buffered']
    #allocation6 [shape = 's32[1]{0}', space=sflag, size = 0x4, scoped, tag = 'scoped memory for tpu_custom_call.1']
    #allocation7 [shape = 'u8[16384]{0}', space=vmem, size = 0x4000, scoped, tag = 'input window, operand 4, single buffered']
    #allocation8 [shape = 'u8[1024]{0}', space=vmem, size = 0x400, scoped, tag = 'input window, operand 6, single buffered']
    #allocation9 [shape = 's32[1]{0}', space=sflag, size = 0x4, scoped, tag = 'scoped memory for tpu_custom_call.1']
    #allocation10 [shape = 'u8[32768]{0}', space=vmem, size = 0x8000, scoped, tag = 'input window, operand 7, single buffered']
    #allocation11 [shape = 'u8[32768]{0}', space=vmem, size = 0x8000, scoped, tag = 'input window, operand 8, single buffered']
    #allocation12 [shape = 's32[1]{0}', space=sflag, size = 0x4, scoped, tag = 'scoped memory for tpu_custom_call.1']
    #allocation13 [shape = 'u8[1024]{0}', space=vmem, size = 0x400, scoped, tag = 'input window, operand 9, single buffered']
    #allocation14 [shape = 'u8[4096]{0}', space=vmem, size = 0x1000, scoped, tag = 'output window, operand 0, single buffered']
    #allocation15 [shape = 'u8[4096]{0}', space=vmem, size = 0x1000, scoped, tag = 'output window, operand 1, single buffered']
    #allocation16 [shape = 's32[1]{0}', space=sflag, size = 0x4, scoped, tag = 'scoped memory for tpu_custom_call.1']
    #allocation17 [shape = 'u8[4096]{0}', space=vmem, size = 0x1000, scoped, tag = 'output window, operand 2, single buffered']
    %20 = vsyncpa [#allocation3], 0
    %21 = vsyncpa [#allocation6], 0
    %22 = vsyncpa [#allocation9], 0
    %23 = vsyncpa [#allocation12], 0
    %24 = vsyncpa [#allocation4], 0
    %25 = vsyncpa [#allocation16], 0
    // Predicated region
    $region2: #{tpu_custom_call.1} parent=1 // pred_check
      _
    $region3: #{tpu_custom_call.1} parent=1 // pred_check_branch
      %27 = sbr.rel (0) target = $region5
    $region4: #{tpu_custom_call.1} parent=1 // pred_region
      _
    $region5: #{tpu_custom_call.1} parent=1 // pred_fallthru
      _
    // Predicated region
    $region6: #{tpu_custom_call.1} parent=1 // pred_check
      _
    $region7: #{tpu_custom_call.1} parent=1 // pred_check_branch
      %29 = sbr.rel (0) target = $region9
    $region8: #{tpu_custom_call.1} parent=1 // pred_region
      _
    $region9: #{tpu_custom_call.1} parent=1 // pred_fallthru
      _
    // Predicated region
    $region10: #{tpu_custom_call.1} parent=1 // pred_check
      _
    $region11: #{tpu_custom_call.1} parent=1 // pred_check_branch
      %31 = sbr.rel (0) target = $region13
    $region12: #{tpu_custom_call.1} parent=1 // pred_region
      %33 = vsyncadd [#allocation3], 0
      %s34 = sshll.u32 %s2, 4
      %s35 = int_to_ptr.hbm [resolvable:$true] %s34
      %s36 = sshll.u32 [#allocation2], 4
      %s37 = int_to_ptr.vmem [resolvable:$true] %s36
      %42 = dma.hbm_to_vmem [thread:$0]  %s35, 256, %s37, [#allocation3], 128, 128, 8
    $region13: #{tpu_custom_call.1} parent=1 // pred_fallthru
      _
    // Predicated region
    $region14: #{tpu_custom_call.1} parent=1 // pred_check
      _
    $region15: #{tpu_custom_call.1} parent=1 // pred_check_branch
      %44 = sbr.rel (0) target = $region17
    $region16: #{tpu_custom_call.1} parent=1 // pred_region
      %46 = vsyncadd [#allocation6], 0
      %s47 = sshll.u32 %s3, 4
      %s48 = int_to_ptr.hbm [resolvable:$true] %s47
      %s49 = sshll.u32 [#allocation5], 4
      %s50 = int_to_ptr.vmem [resolvable:$true] %s49
      %55 = dma.hbm_to_vmem [thread:$0]  %s48, 256, %s50, [#allocation6], 128, 128, 8
    $region17: #{tpu_custom_call.1} parent=1 // pred_fallthru
      _
    // Predicated region
    $region18: #{tpu_custom_call.1} parent=1 // pred_check
      _
    $region19: #{tpu_custom_call.1} parent=1 // pred_check_branch
      %57 = sbr.rel (0) target = $region21
    $region20: #{tpu_custom_call.1} parent=1 // pred_region
      %59 = vsyncadd [#allocation6], 0
      %s60 = sshll.u32 %s4, 4
      %s61 = int_to_ptr.hbm [resolvable:$true] %s60
      %s62 = sshll.u32 [#allocation7], 4
      %s63 = int_to_ptr.vmem [resolvable:$true] %s62
      %68 = dma.hbm_to_vmem [thread:$0]  %s61, 512, %s63, [#allocation6], 128, 128, 8
    $region21: #{tpu_custom_call.1} parent=1 // pred_fallthru
      _
    // Predicated region
    $region22: #{tpu_custom_call.1} parent=1 // pred_check
      _
    $region23: #{tpu_custom_call.1} parent=1 // pred_check_branch
      %70 = sbr.rel (0) target = $region25
    $region24: #{tpu_custom_call.1} parent=1 // pred_region
      _
    $region25: #{tpu_custom_call.1} parent=1 // pred_fallthru
      _
    // Predicated region
    $region26: #{tpu_custom_call.1} parent=1 // pred_check
      _
    $region27: #{tpu_custom_call.1} parent=1 // pred_check_branch
      %72 = sbr.rel (0) target = $region29
    $region28: #{tpu_custom_call.1} parent=1 // pred_region
      %74 = vsyncadd [#allocation9], 0
      %s76 = sshll.u32 %s6, 4
      %s77 = int_to_ptr.hbm [resolvable:$true] %s76
      %s78 = sshll.u32 [#allocation8], 4
      %s79 = int_to_ptr.vmem [resolvable:$true] %s78
      %81 = dma.hbm_to_vmem [thread:$0]  %s77, 32, %s79, [#allocation9]
    $region29: #{tpu_custom_call.1} parent=1 // pred_fallthru
      _
    // Predicated region
    $region30: #{tpu_custom_call.1} parent=1 // pred_check
      _
    $region31: #{tpu_custom_call.1} parent=1 // pred_check_branch
      %83 = sbr.rel (0) target = $region33
    $region32: #{tpu_custom_call.1} parent=1 // pred_region
      %85 = vsyncadd [#allocation9], 0
      %s86 = sshll.u32 %s7, 4
      %s87 = int_to_ptr.hbm [resolvable:$true] %s86
      %s88 = sshll.u32 [#allocation10], 4
      %s89 = int_to_ptr.vmem [resolvable:$true] %s88
      %94 = dma.hbm_to_vmem [thread:$0]  %s87, 1024, %s89, [#allocation9], 128, 128, 8
    $region33: #{tpu_custom_call.1} parent=1 // pred_fallthru
      _
    // Predicated region
    $region34: #{tpu_custom_call.1} parent=1 // pred_check
      _
    $region35: #{tpu_custom_call.1} parent=1 // pred_check_branch
      %96 = sbr.rel (0) target = $region37
    $region36: #{tpu_custom_call.1} parent=1 // pred_region
      %98 = vsyncadd [#allocation12], 0
      %s99 = sshll.u32 %s8, 4
      %s100 = int_to_ptr.hbm [resolvable:$true] %s99
      %s101 = sshll.u32 [#allocation11], 4
      %s102 = int_to_ptr.vmem [resolvable:$true] %s101
      %107 = dma.hbm_to_vmem [thread:$0]  %s100, 1024, %s102, [#allocation12], 128, 128, 8
    $region37: #{tpu_custom_call.1} parent=1 // pred_fallthru
      _
    // Predicated region
    $region38: #{tpu_custom_call.1} parent=1 // pred_check
      _
    $region39: #{tpu_custom_call.1} parent=1 // pred_check_branch
      %109 = sbr.rel (0) target = $region41
    $region40: #{tpu_custom_call.1} parent=1 // pred_region
      %111 = vsyncadd [#allocation12], 0
      %s113 = sshll.u32 %s9, 4
      %s114 = int_to_ptr.hbm [resolvable:$true] %s113
      %s115 = sshll.u32 [#allocation13], 4
      %s116 = int_to_ptr.vmem [resolvable:$true] %s115
      %118 = dma.hbm_to_vmem [thread:$0]  %s114, 32, %s116, [#allocation12]
    $region41: #{tpu_custom_call.1} parent=1 // pred_fallthru
      _
    // Predicated region
    $region42: #{tpu_custom_call.1} parent=1 // pred_check
      _
    $region43: #{tpu_custom_call.1} parent=1 // pred_check_branch
      %120 = sbr.rel (0) target = $region45
    $region44: #{tpu_custom_call.1} parent=1 // pred_region
      _
    $region45: #{tpu_custom_call.1} parent=1 // pred_fallthru
      _
    // Predicated region
    $region46: #{tpu_custom_call.1} parent=1 // pred_check
      _
    $region47: #{tpu_custom_call.1} parent=1 // pred_check_branch
      %122 = sbr.rel (0) target = $region49
    $region48: #{tpu_custom_call.1} parent=1 // pred_region
      _
    $region49: #{tpu_custom_call.1} parent=1 // pred_fallthru
      _
    // Predicated region
    $region50: #{tpu_custom_call.1} parent=1 // pred_check
      _
    $region51: #{tpu_custom_call.1} parent=1 // pred_check_branch
      %124 = sbr.rel (0) target = $region53
    $region52: #{tpu_custom_call.1} parent=1 // pred_region
      %126 = dma.done [#allocation3], 256
    $region53: #{tpu_custom_call.1} parent=1 // pred_fallthru
      _
    // Predicated region
    $region54: #{tpu_custom_call.1} parent=1 // pred_check
      _
    $region55: #{tpu_custom_call.1} parent=1 // pred_check_branch
      %128 = sbr.rel (0) target = $region57
    $region56: #{tpu_custom_call.1} parent=1 // pred_region
      %130 = dma.done [#allocation6], 256
    $region57: #{tpu_custom_call.1} parent=1 // pred_fallthru
      _
    // Predicated region
    $region58: #{tpu_custom_call.1} parent=1 // pred_check
      _
    $region59: #{tpu_custom_call.1} parent=1 // pred_check_branch
      %132 = sbr.rel (0) target = $region61
    $region60: #{tpu_custom_call.1} parent=1 // pred_region
      %134 = dma.done [#allocation6], 512
    $region61: #{tpu_custom_call.1} parent=1 // pred_fallthru
      _
    // Predicated region
    $region62: #{tpu_custom_call.1} parent=1 // pred_check
      _
    $region63: #{tpu_custom_call.1} parent=1 // pred_check_branch
      %136 = sbr.rel (0) target = $region65
    $region64: #{tpu_custom_call.1} parent=1 // pred_region
      %138 = dma.done [#allocation9], 32
    $region65: #{tpu_custom_call.1} parent=1 // pred_fallthru
      _
    // Predicated region
    $region66: #{tpu_custom_call.1} parent=1 // pred_check
      _
    $region67: #{tpu_custom_call.1} parent=1 // pred_check_branch
      %140 = sbr.rel (0) target = $region69
    $region68: #{tpu_custom_call.1} parent=1 // pred_region
      %142 = dma.done [#allocation9], 1024
    $region69: #{tpu_custom_call.1} parent=1 // pred_fallthru
      _
    // Predicated region
    $region70: #{tpu_custom_call.1} parent=1 // pred_check
      _
    $region71: #{tpu_custom_call.1} parent=1 // pred_check_branch
      %144 = sbr.rel (0) target = $region73
    $region72: #{tpu_custom_call.1} parent=1 // pred_region
      %146 = dma.done [#allocation12], 1024
    $region73: #{tpu_custom_call.1} parent=1 // pred_fallthru
      _
    // Predicated region
    $region74: #{tpu_custom_call.1} parent=1 // pred_check
      _
    $region75: #{tpu_custom_call.1} parent=1 // pred_check_branch
      %148 = sbr.rel (0) target = $region77
    $region76: #{tpu_custom_call.1} parent=1 // pred_region
      %150 = dma.done [#allocation12], 32
    $region77: #{tpu_custom_call.1} parent=1 // pred_fallthru
      _
    %v152 = vld [vmem:[%s0] sm:$0xff]
    %v153 = vlaneseq
    %v154 = vand.u32 %v153, 127
    %155 = vset.pattern.permute.xlu0 0
    %156 = vperm.xlu0 %155, %v152
    %v157 = vpop.permute.xlu0 %156
    %vm158 = vcmp.eq.s32.totalorder %v154, %v157
    %v159 = vsel %vm158, 1, 0
    %v160 = vcvt.s32.f32 %v159
    %v161 = vpack.c.bf16 %v160, %v160
    %v162 = vld [vmem:[%s1] sm:$0xf]
    %v163 = vld [vmem:[%s1 + $0x4] sm:$0xf]
    %v164 = vld [vmem:[%s1 + $0x8] sm:$0xf]
    %v165 = vld [vmem:[%s1 + $0xc] sm:$0xf]
    %v166 = vld [vmem:[%s1 + $0x10] sm:$0xf]
    %v167 = vld [vmem:[%s1 + $0x14] sm:$0xf]
    %v168 = vld [vmem:[%s1 + $0x18] sm:$0xf]
    %v169 = vld [vmem:[%s1 + $0x1c] sm:$0xf]
    %v170 = vld [vmem:[%s1 + $0x20] sm:$0xf]
    %v171 = vld [vmem:[%s1 + $0x24] sm:$0xf]
    %v172 = vld [vmem:[%s1 + $0x28] sm:$0xf]
    %v173 = vld [vmem:[%s1 + $0x2c] sm:$0xf]
    %v174 = vld [vmem:[%s1 + $0x30] sm:$0xf]
    %v175 = vld [vmem:[%s1 + $0x34] sm:$0xf]
    %v176 = vld [vmem:[%s1 + $0x38] sm:$0xf]
    %v177 = vld [vmem:[%s1 + $0x3c] sm:$0xf]
    %v194 = vunpack.c.l.b16 %v162
    %v195 = vunpack.c.l.b16 %v163
    %v196 = vunpack.c.l.b16 %v164
    %v197 = vunpack.c.l.b16 %v165
    %v198 = vunpack.c.l.b16 %v166
    %v199 = vunpack.c.l.b16 %v167
    %v200 = vunpack.c.l.b16 %v168
    %v201 = vunpack.c.l.b16 %v169
    %v202 = vunpack.c.l.b16 %v170
    %v203 = vunpack.c.l.b16 %v171
    %v204 = vunpack.c.l.b16 %v172
    %v205 = vunpack.c.l.b16 %v173
    %v206 = vunpack.c.l.b16 %v174
    %v207 = vunpack.c.l.b16 %v175
    %v208 = vunpack.c.l.b16 %v176
    %v209 = vunpack.c.l.b16 %v177
    %v210 = vpack.c.b16 %v195, %v194
    %v211 = vpack.c.b16 %v197, %v196
    %v212 = vpack.c.b16 %v199, %v198
    %v213 = vpack.c.b16 %v201, %v200
    %v214 = vpack.c.b16 %v203, %v202
    %v215 = vpack.c.b16 %v205, %v204
    %v216 = vpack.c.b16 %v207, %v206
    %v217 = vpack.c.b16 %v209, %v208
    %226 = vmatpush.bf16.msra.mxu0 %v217
    %227 = vmatpush.bf16.msra.mxu0 %v216
    %228 = vmatpush.bf16.msra.mxu0 %v215
    %229 = vmatpush.bf16.msra.mxu0 %v214
    %230 = vmatpush.bf16.msra.mxu0 %v213
    %231 = vmatpush.bf16.msra.mxu0 %v212
    %232 = vmatpush.bf16.msra.mxu0 %v211
    %233 = vmatpush.bf16.msra.mxu0 %v210
    %234 = vmatmul.bf16.gmra.mxu0 %v161
    %v235 = vpop.f32.mrf.mxu0
    %v236 = vadd.f32 0.0, %v235
    %v237 = vpop.f32.mrf.mxu0
    %238 = vdwg.mxu0
    %v239 = vpack.c.bf16 %v236, %v236
    %v240 = vld [vmem:[#allocation2] sm:$0xff]
    %v241 = vld [vmem:[#allocation5] sm:$0xff]
    %v242 = vld [vmem:[#allocation7] sm:$0xff]
    %v243 = vld [vmem:[#allocation7 + $0x8] sm:$0xff]
    %v244 = vld [vmem:[#allocation7 + $0x10] sm:$0xff]
    %v245 = vld [vmem:[#allocation7 + $0x18] sm:$0xff]
    %v246 = vpack.c.bf16 %v240, %v240
    %v247 = vld [vmem:[%s5] sm:$0xff]
    %v248 = vld [vmem:[%s5 + $0x8] sm:$0xff]
    %v249 = vld [vmem:[%s5 + $0x10] sm:$0xff]
    %v250 = vld [vmem:[%s5 + $0x18] sm:$0xff]
    %v251 = vld [vmem:[%s5 + $0x20] sm:$0xff]
    %v252 = vld [vmem:[%s5 + $0x28] sm:$0xff]
    %v253 = vld [vmem:[%s5 + $0x30] sm:$0xff]
    %v254 = vld [vmem:[%s5 + $0x38] sm:$0xff]
    %v263 = vunpack.c.l.b16 %v247
    %v264 = vunpack.c.h.b16 %v247
    %v265 = vunpack.c.l.b16 %v248
    %v266 = vunpack.c.h.b16 %v248
    %v267 = vunpack.c.l.b16 %v249
    %v268 = vunpack.c.h.b16 %v249
    %v269 = vunpack.c.l.b16 %v250
    %v270 = vunpack.c.h.b16 %v250
    %v271 = vunpack.c.l.b16 %v251
    %v272 = vunpack.c.h.b16 %v251
    %v273 = vunpack.c.l.b16 %v252
    %v274 = vunpack.c.h.b16 %v252
    %v275 = vunpack.c.l.b16 %v253
    %v276 = vunpack.c.h.b16 %v253
    %v277 = vunpack.c.l.b16 %v254
    %v278 = vunpack.c.h.b16 %v254
    %v279 = vpack.c.b16 %v265, %v263
    %v280 = vpack.c.b16 %v266, %v264
    %v281 = vpack.c.b16 %v269, %v267
    %v282 = vpack.c.b16 %v270, %v268
    %v283 = vpack.c.b16 %v273, %v271
    %v284 = vpack.c.b16 %v274, %v272
    %v285 = vpack.c.b16 %v277, %v275
    %v286 = vpack.c.b16 %v278, %v276
    %vm295 = vcmask 523264
    %v297 = vsel %vm295, %v246, 0
    %299 = vmatpush.bf16.msra.mxu0 0
    %300 = vmatpush.bf16.msra.mxu0 0
    %301 = vmatpush.bf16.msra.mxu0 0
    %302 = vmatpush.bf16.msra.mxu0 0
    %303 = vmatpush.bf16.msra.mxu0 %v285
    %304 = vmatpush.bf16.msra.mxu0 %v283
    %305 = vmatpush.bf16.msra.mxu0 %v281
    %306 = vmatpush.bf16.msra.mxu0 %v279
    %307 = vmatmul.bf16.gmra.mxu0 %v297
    %v308 = vpop.f32.mrf.mxu0
    %v309 = vadd.f32 0.0, %v308
    %v310 = vpop.f32.mrf.mxu0
    %311 = vdwg.mxu0
    %312 = vmatpush.bf16.msra.mxu0 0
    %313 = vmatpush.bf16.msra.mxu0 0
    %314 = vmatpush.bf16.msra.mxu0 0
    %315 = vmatpush.bf16.msra.mxu0 0
    %316 = vmatpush.bf16.msra.mxu0 %v286
    %317 = vmatpush.bf16.msra.mxu0 %v284
    %318 = vmatpush.bf16.msra.mxu0 %v282
    %319 = vmatpush.bf16.msra.mxu0 %v280
    %320 = vmatmul.bf16.gmra.mxu0 %v297
    %v321 = vpop.f32.mrf.mxu0
    %v322 = vadd.f32 0.0, %v321
    %v323 = vpop.f32.mrf.mxu0
    %324 = vdwg.mxu0
    %v329 = vunpack.c.l.b16 %v242
    %v330 = vunpack.c.h.b16 %v242
    %v331 = vunpack.c.l.b16 %v243
    %v332 = vunpack.c.h.b16 %v243
    %v333 = vunpack.c.l.b16 %v244
    %v334 = vunpack.c.h.b16 %v244
    %v335 = vunpack.c.l.b16 %v245
    %v336 = vunpack.c.h.b16 %v245
    %v337 = vpack.c.b16 %v331, %v329
    %v338 = vpack.c.b16 %v332, %v330
    %v339 = vpack.c.b16 %v335, %v333
    %v340 = vpack.c.b16 %v336, %v334
    %vm345 = vcmask 261120
    %v347 = vsel %vm345, %v239, 0
    %349 = vmatpush.bf16.msra.mxu0 0
    %350 = vmatpush.bf16.msra.mxu0 0
    %351 = vmatpush.bf16.msra.mxu0 0
    %352 = vmatpush.bf16.msra.mxu0 0
    %353 = vmatpush.bf16.msra.mxu0 0
    %354 = vmatpush.bf16.msra.mxu0 0
    %355 = vmatpush.bf16.msra.mxu0 %v339
    %356 = vmatpush.bf16.msra.mxu0 %v337
    %357 = vmatmul.bf16.gmra.mxu0 %v347
    %v358 = vpop.f32.mrf.mxu0
    %v359 = vadd.f32 %v309, %v358
    %v360 = vpop.f32.mrf.mxu0
    %361 = vdwg.mxu0
    %362 = vmatpush.bf16.msra.mxu0 0
    %363 = vmatpush.bf16.msra.mxu0 0
    %364 = vmatpush.bf16.msra.mxu0 0
    %365 = vmatpush.bf16.msra.mxu0 0
    %366 = vmatpush.bf16.msra.mxu0 0
    %367 = vmatpush.bf16.msra.mxu0 0
    %368 = vmatpush.bf16.msra.mxu0 %v340
    %369 = vmatpush.bf16.msra.mxu0 %v338
    %370 = vmatmul.bf16.gmra.mxu0 %v347
    %v371 = vpop.f32.mrf.mxu0
    %v372 = vadd.f32 %v322, %v371
    %v373 = vpop.f32.mrf.mxu0
    %374 = vdwg.mxu0
    %v375 = vld [vmem:[#allocation8] sm:$0x3]
    %v377 = vperm.slane %v375, 0
    %v378 = vperm.slane %v375, 1
    %v381 = vadd.f32 %v359, %v377
    %v382 = vadd.f32 %v372, %v378
    %v383 = vxor.u32 %v381, 2147483648
    %v384 = vxor.u32 %v382, 2147483648
    %v385 = vmul.f32 %v383, 1.442695
    %v386 = vpow.pop %v385
    %v387 = vmul.f32 %v384, 1.442695
    %v388 = vpow.pop %v387
    %v389 = vadd.f32 %v386, 1.0
    %v390 = vadd.f32 %v388, 1.0
    %v391 = vrcp.pop %v389
    %v392 = vmul.f32 %v389, %v391
    %v393 = vsub.f32 1.0, %v392
    %v394 = vmul.f32 %v391, %v393
    %v395 = vadd.f32 %v391, %v394
    %vm396 = vweird.f32 %v389
    %vm397 = vweird.f32 %v391
    %vm398 = vmor %vm396, %vm397
    %v399 = vsel %vm398, %v391, %v395
    %v400 = vand.u32 2147483647, %v389
    %vm401 = vcmp.eq.f32.partialorder %v400, 8.507059e+37
    %v402 = vand.u32 %v389, 2147483648
    %v403 = vor.u32 1.1754944e-38, %v402
    %v404 = vsel %vm401, %v403, %v399
    %v405 = vmul.f32 1.0, %v404
    %v406 = vrcp.pop %v390
    %v407 = vmul.f32 %v390, %v406
    %v408 = vsub.f32 1.0, %v407
    %v409 = vmul.f32 %v406, %v408
    %v410 = vadd.f32 %v406, %v409
    %vm411 = vweird.f32 %v390
    %vm412 = vweird.f32 %v406
    %vm413 = vmor %vm411, %vm412
    %v414 = vsel %vm413, %v406, %v410
    %v415 = vand.u32 2147483647, %v390
    %vm416 = vcmp.eq.f32.partialorder %v415, 8.507059e+37
    %v417 = vand.u32 %v390, 2147483648
    %v418 = vor.u32 1.1754944e-38, %v417
    %v419 = vsel %vm416, %v418, %v414
    %v420 = vmul.f32 1.0, %v419
    %v421 = vtanh.pop %v382
    %423 = vrot.lane.b32.xlu0 %v241, 64
    %v424 = vpop.permute.xlu0 %423
    %v426 = vmul.f32 %v405, %v424
    %428 = vrot.lane.b32.xlu0 %v421, 64
    %v429 = vpop.permute.xlu0 %428
    %v431 = vmul.f32 %v405, %v429
    %433 = vrot.lane.b32.xlu0 %v431, 64
    %v434 = vpop.permute.xlu0 %433
    %v436 = vadd.f32 %v426, %v434
    %v437 = vtanh.pop %v436
    %439 = vrot.lane.b32.xlu0 %v437, 64
    %v440 = vpop.permute.xlu0 %439
    %v442 = vmul.f32 %v420, %v440
    %443 = vst.msk [vmem:[#allocation15] sm:$0xff] %vm295, %v442
    %445 = vrot.lane.b32.xlu0 %v436, 64
    %v446 = vpop.permute.xlu0 %445
    %448 = vst.msk [vmem:[#allocation17] sm:$0xff] %vm295, %v446
    %v449 = vpack.c.bf16 %v442, %v442
    %s450 = scalar_lea.vmem [#allocation2], 8
    %v451 = vld [vmem:[%s450] sm:$0xff]
    %s452 = scalar_lea.vmem [#allocation5], 8
    %v453 = vld [vmem:[%s452] sm:$0xff]
    %v454 = vld [vmem:[#allocation10] sm:$0xff]
    %v455 = vld [vmem:[#allocation10 + $0x8] sm:$0xff]
    %v456 = vld [vmem:[#allocation10 + $0x10] sm:$0xff]
    %v457 = vld [vmem:[#allocation10 + $0x18] sm:$0xff]
    %v458 = vld [vmem:[#allocation10 + $0x20] sm:$0xff]
    %v459 = vld [vmem:[#allocation10 + $0x28] sm:$0xff]
    %v460 = vld [vmem:[#allocation10 + $0x30] sm:$0xff]
    %v461 = vld [vmem:[#allocation10 + $0x38] sm:$0xff]
    %v462 = vpack.c.bf16 %v451, %v451
    %v463 = vld [vmem:[#allocation11] sm:$0xff]
    %v464 = vld [vmem:[#allocation11 + $0x8] sm:$0xff]
    %v465 = vld [vmem:[#allocation11 + $0x10] sm:$0xff]
    %v466 = vld [vmem:[#allocation11 + $0x18] sm:$0xff]
    %v467 = vld [vmem:[#allocation11 + $0x20] sm:$0xff]
    %v468 = vld [vmem:[#allocation11 + $0x28] sm:$0xff]
    %v469 = vld [vmem:[#allocation11 + $0x30] sm:$0xff]
    %v470 = vld [vmem:[#allocation11 + $0x38] sm:$0xff]
    %v479 = vunpack.c.l.b16 %v463
    %v480 = vunpack.c.h.b16 %v463
    %v481 = vunpack.c.l.b16 %v464
    %v482 = vunpack.c.h.b16 %v464
    %v483 = vunpack.c.l.b16 %v465
    %v484 = vunpack.c.h.b16 %v465
    %v485 = vunpack.c.l.b16 %v466
    %v486 = vunpack.c.h.b16 %v466
    %v487 = vunpack.c.l.b16 %v467
    %v488 = vunpack.c.h.b16 %v467
    %v489 = vunpack.c.l.b16 %v468
    %v490 = vunpack.c.h.b16 %v468
    %v491 = vunpack.c.l.b16 %v469
    %v492 = vunpack.c.h.b16 %v469
    %v493 = vunpack.c.l.b16 %v470
    %v494 = vunpack.c.h.b16 %v470
    %v495 = vpack.c.b16 %v481, %v479
    %v496 = vpack.c.b16 %v482, %v480
    %v497 = vpack.c.b16 %v485, %v483
    %v498 = vpack.c.b16 %v486, %v484
    %v499 = vpack.c.b16 %v489, %v487
    %v500 = vpack.c.b16 %v490, %v488
    %v501 = vpack.c.b16 %v493, %v491
    %v502 = vpack.c.b16 %v494, %v492
    %v512 = vsel %vm295, %v462, 0
    %514 = vmatpush.bf16.msra.mxu0 0
    %515 = vmatpush.bf16.msra.mxu0 0
    %516 = vmatpush.bf16.msra.mxu0 0
    %517 = vmatpush.bf16.msra.mxu0 0
    %518 = vmatpush.bf16.msra.mxu0 %v501
    %519 = vmatpush.bf16.msra.mxu0 %v499
    %520 = vmatpush.bf16.msra.mxu0 %v497
    %521 = vmatpush.bf16.msra.mxu0 %v495
    %522 = vmatmul.bf16.gmra.mxu0 %v512
    %v523 = vpop.f32.mrf.mxu0
    %v524 = vadd.f32 0.0, %v523
    %v525 = vpop.f32.mrf.mxu0
    %526 = vdwg.mxu0
    %527 = vmatpush.bf16.msra.mxu0 0
    %528 = vmatpush.bf16.msra.mxu0 0
    %529 = vmatpush.bf16.msra.mxu0 0
    %530 = vmatpush.bf16.msra.mxu0 0
    %531 = vmatpush.bf16.msra.mxu0 %v502
    %532 = vmatpush.bf16.msra.mxu0 %v500
    %533 = vmatpush.bf16.msra.mxu0 %v498
    %534 = vmatpush.bf16.msra.mxu0 %v496
    %535 = vmatmul.bf16.gmra.mxu0 %v512
    %v536 = vpop.f32.mrf.mxu0
    %v537 = vadd.f32 0.0, %v536
    %v538 = vpop.f32.mrf.mxu0
    %539 = vdwg.mxu0
    %v548 = vunpack.c.l.b16 %v454
    %v549 = vunpack.c.h.b16 %v454
    %v550 = vunpack.c.l.b16 %v455
    %v551 = vunpack.c.h.b16 %v455
    %v552 = vunpack.c.l.b16 %v456
    %v553 = vunpack.c.h.b16 %v456
    %v554 = vunpack.c.l.b16 %v457
    %v555 = vunpack.c.h.b16 %v457
    %v556 = vunpack.c.l.b16 %v458
    %v557 = vunpack.c.h.b16 %v458
    %v558 = vunpack.c.l.b16 %v459
    %v559 = vunpack.c.h.b16 %v459
    %v560 = vunpack.c.l.b16 %v460
    %v561 = vunpack.c.h.b16 %v460
    %v562 = vunpack.c.l.b16 %v461
    %v563 = vunpack.c.h.b16 %v461
    %v564 = vpack.c.b16 %v550, %v548
    %v565 = vpack.c.b16 %v551, %v549
    %v566 = vpack.c.b16 %v554, %v552
    %v567 = vpack.c.b16 %v555, %v553
    %v568 = vpack.c.b16 %v558, %v556
    %v569 = vpack.c.b16 %v559, %v557
    %v570 = vpack.c.b16 %v562, %v560
    %v571 = vpack.c.b16 %v563, %v561
    %v581 = vsel %vm295, %v449, 0
    %583 = vmatpush.bf16.msra.mxu0 0
    %584 = vmatpush.bf16.msra.mxu0 0
    %585 = vmatpush.bf16.msra.mxu0 0
    %586 = vmatpush.bf16.msra.mxu0 0
    %587 = vmatpush.bf16.msra.mxu0 %v570
    %588 = vmatpush.bf16.msra.mxu0 %v568
    %589 = vmatpush.bf16.msra.mxu0 %v566
    %590 = vmatpush.bf16.msra.mxu0 %v564
    %591 = vmatmul.bf16.gmra.mxu0 %v581
    %v592 = vpop.f32.mrf.mxu0
    %v593 = vadd.f32 %v524, %v592
    %v594 = vpop.f32.mrf.mxu0
    %595 = vdwg.mxu0
    %596 = vmatpush.bf16.msra.mxu0 0
    %597 = vmatpush.bf16.msra.mxu0 0
    %598 = vmatpush.bf16.msra.mxu0 0
    %599 = vmatpush.bf16.msra.mxu0 0
    %600 = vmatpush.bf16.msra.mxu0 %v571
    %601 = vmatpush.bf16.msra.mxu0 %v569
    %602 = vmatpush.bf16.msra.mxu0 %v567
    %603 = vmatpush.bf16.msra.mxu0 %v565
    %604 = vmatmul.bf16.gmra.mxu0 %v581
    %v605 = vpop.f32.mrf.mxu0
    %v606 = vadd.f32 %v537, %v605
    %v607 = vpop.f32.mrf.mxu0
    %608 = vdwg.mxu0
    %v609 = vld [vmem:[#allocation13] sm:$0x3]
    %v611 = vperm.slane %v609, 0
    %v612 = vperm.slane %v609, 1
    %v615 = vadd.f32 %v593, %v611
    %v616 = vadd.f32 %v606, %v612
    %v617 = vxor.u32 %v615, 2147483648
    %v618 = vxor.u32 %v616, 2147483648
    %v619 = vmul.f32 %v617, 1.442695
    %v620 = vpow.pop %v619
    %v621 = vmul.f32 %v618, 1.442695
    %v622 = vpow.pop %v621
    %v623 = vadd.f32 %v620, 1.0
    %v624 = vadd.f32 %v622, 1.0
    %v625 = vrcp.pop %v623
    %v626 = vmul.f32 %v623, %v625
    %v627 = vsub.f32 1.0, %v626
    %v628 = vmul.f32 %v625, %v627
    %v629 = vadd.f32 %v625, %v628
    %vm630 = vweird.f32 %v623
    %vm631 = vweird.f32 %v625
    %vm632 = vmor %vm630, %vm631
    %v633 = vsel %vm632, %v625, %v629
    %v634 = vand.u32 2147483647, %v623
    %vm635 = vcmp.eq.f32.partialorder %v634, 8.507059e+37
    %v636 = vand.u32 %v623, 2147483648
    %v637 = vor.u32 1.1754944e-38, %v636
    %v638 = vsel %vm635, %v637, %v633
    %v639 = vmul.f32 1.0, %v638
    %v640 = vrcp.pop %v624
    %v641 = vmul.f32 %v624, %v640
    %v642 = vsub.f32 1.0, %v641
    %v643 = vmul.f32 %v640, %v642
    %v644 = vadd.f32 %v640, %v643
    %vm645 = vweird.f32 %v624
    %vm646 = vweird.f32 %v640
    %vm647 = vmor %vm645, %vm646
    %v648 = vsel %vm647, %v640, %v644
    %v649 = vand.u32 2147483647, %v624
    %vm650 = vcmp.eq.f32.partialorder %v649, 8.507059e+37
    %v651 = vand.u32 %v624, 2147483648
    %v652 = vor.u32 1.1754944e-38, %v651
    %v653 = vsel %vm650, %v652, %v648
    %v654 = vmul.f32 1.0, %v653
    %v655 = vtanh.pop %v616
    %657 = vrot.lane.b32.xlu0 %v453, 64
    %v658 = vpop.permute.xlu0 %657
    %v660 = vmul.f32 %v639, %v658
    %662 = vrot.lane.b32.xlu0 %v655, 64
    %v663 = vpop.permute.xlu0 %662
    %v665 = vmul.f32 %v639, %v663
    %667 = vrot.lane.b32.xlu0 %v665, 64
    %v668 = vpop.permute.xlu0 %667
    %v670 = vadd.f32 %v660, %v668
    %v671 = vtanh.pop %v670
    %673 = vrot.lane.b32.xlu0 %v671, 64
    %v674 = vpop.permute.xlu0 %673
    %v676 = vmul.f32 %v654, %v674
    %678 = vrot.lane.b32.xlu0 %v676, 64
    %v679 = vpop.permute.xlu0 %678
    %vm681 = vcmask 1048064
    %682 = vst.msk [vmem:[#allocation15] sm:$0xff] %vm681, %v679
    %683 = vst.msk [vmem:[#allocation17] sm:$0xff] %vm681, %v670
    %v684 = vpack.c.bf16 %v676, %v676
    %v685 = vld [vmem:[%s10] sm:$0xf]
    %v686 = vld [vmem:[%s10 + $0x4] sm:$0xf]
    %v687 = vld [vmem:[%s10 + $0x8] sm:$0xf]
    %v688 = vld [vmem:[%s10 + $0xc] sm:$0xf]
    %v689 = vld [vmem:[%s10 + $0x10] sm:$0xf]
    %v690 = vld [vmem:[%s10 + $0x14] sm:$0xf]
    %v691 = vld [vmem:[%s10 + $0x18] sm:$0xf]
    %v692 = vld [vmem:[%s10 + $0x1c] sm:$0xf]
    %v693 = vld [vmem:[%s11] sm:$0x1]
    %v695 = vperm.slane %v693, 0
    %v705 = vunpack.c.l.b16 %v685
    %v706 = vunpack.c.l.b16 %v686
    %v707 = vunpack.c.l.b16 %v687
    %v708 = vunpack.c.l.b16 %v688
    %v709 = vunpack.c.l.b16 %v689
    %v710 = vunpack.c.l.b16 %v690
    %v711 = vunpack.c.l.b16 %v691
    %v712 = vunpack.c.l.b16 %v692
    %v713 = vpack.c.b16 %v706, %v705
    %v714 = vpack.c.b16 %v708, %v707
    %v715 = vpack.c.b16 %v710, %v709
    %v716 = vpack.c.b16 %v712, %v711
    %v722 = vsel %vm295, %v684, 0
    %724 = vmatpush.bf16.msra.mxu0 0
    %725 = vmatpush.bf16.msra.mxu0 0
    %726 = vmatpush.bf16.msra.mxu0 0
    %727 = vmatpush.bf16.msra.mxu0 0
    %728 = vmatpush.bf16.msra.mxu0 %v716
    %729 = vmatpush.bf16.msra.mxu0 %v715
    %730 = vmatpush.bf16.msra.mxu0 %v714
    %731 = vmatpush.bf16.msra.mxu0 %v713
    %732 = vmatmul.bf16.gmra.mxu0 %v722
    %v733 = vpop.f32.mrf.mxu0
    %v734 = vadd.f32 %v695, %v733
    %v735 = vpop.f32.mrf.mxu0
    %736 = vdwg.mxu0
    %737 = vst [vmem:[#allocation14] sm:$0xff] %v734
    // Predicated region
    $region78: #{tpu_custom_call.1} parent=1 // pred_check
      _
    $region79: #{tpu_custom_call.1} parent=1 // pred_check_branch
      %739 = sbr.rel (0) target = $region81
    $region80: #{tpu_custom_call.1} parent=1 // pred_region
      %741 = vsyncadd [#allocation4], 0
      %s743 = sshll.u32 [#allocation14], 4
      %s744 = int_to_ptr.vmem [resolvable:$true] %s743
      %s745 = sshll.u32 %s12, 4
      %s746 = int_to_ptr.hbm [resolvable:$true] %s745
      %748 = dma.vmem_to_hbm [thread:$0]  %s744, 128, %s746, [#allocation4]
    $region81: #{tpu_custom_call.1} parent=1 // pred_fallthru
      _
    // Predicated region
    $region82: #{tpu_custom_call.1} parent=1 // pred_check
      _
    $region83: #{tpu_custom_call.1} parent=1 // pred_check_branch
      %750 = sbr.rel (0) target = $region85
    $region84: #{tpu_custom_call.1} parent=1 // pred_region
      %752 = vsyncadd [#allocation16], 0
      %s754 = sshll.u32 [#allocation15], 4
      %s755 = int_to_ptr.vmem [resolvable:$true] %s754
      %s756 = sshll.u32 %s13, 4
      %s757 = int_to_ptr.hbm [resolvable:$true] %s756
      %759 = dma.vmem_to_hbm [thread:$0]  %s755, 128, %s757, [#allocation16]
    $region85: #{tpu_custom_call.1} parent=1 // pred_fallthru
      _
    // Predicated region
    $region86: #{tpu_custom_call.1} parent=1 // pred_check
      _
    $region87: #{tpu_custom_call.1} parent=1 // pred_check_branch
      %761 = sbr.rel (0) target = $region89
    $region88: #{tpu_custom_call.1} parent=1 // pred_region
      %763 = vsyncadd [#allocation16], 0
      %s765 = sshll.u32 [#allocation17], 4
      %s766 = int_to_ptr.vmem [resolvable:$true] %s765
      %s767 = sshll.u32 %s14, 4
      %s768 = int_to_ptr.hbm [resolvable:$true] %s767
      %770 = dma.vmem_to_hbm [thread:$0]  %s766, 128, %s768, [#allocation16]
    $region89: #{tpu_custom_call.1} parent=1 // pred_fallthru
      _
    // Predicated region
    $region90: #{tpu_custom_call.1} parent=1 // pred_check
      _
    $region91: #{tpu_custom_call.1} parent=1 // pred_check_branch
      %772 = sbr.rel (0) target = $region93
    $region92: #{tpu_custom_call.1} parent=1 // pred_region
      %774 = dma.done [#allocation4], 128
    $region93: #{tpu_custom_call.1} parent=1 // pred_fallthru
      _
    // Predicated region
    $region94: #{tpu_custom_call.1} parent=1 // pred_check
      _
    $region95: #{tpu_custom_call.1} parent=1 // pred_check_branch
      %776 = sbr.rel (0) target = $region97
    $region96: #{tpu_custom_call.1} parent=1 // pred_region
      %778 = dma.done [#allocation16], 128
    $region97: #{tpu_custom_call.1} parent=1 // pred_fallthru
      _
    // Predicated region
    $region98: #{tpu_custom_call.1} parent=1 // pred_check
      _
    $region99: #{tpu_custom_call.1} parent=1 // pred_check_branch
      %780 = sbr.rel (0) target = $region101
    $region100: #{tpu_custom_call.1} parent=1 // pred_region
      %782 = dma.done [#allocation16], 128
    $region101: #{tpu_custom_call.1} parent=1 // pred_fallthru
      _
    %783 = vsyncpa [#allocation3], 1
    %784 = vsyncpa [#allocation6], 1
    %785 = vsyncpa [#allocation9], 1
    %786 = vsyncpa [#allocation12], 1
    %787 = vsyncpa [#allocation4], 1
    %788 = vsyncpa [#allocation16], 1

</llo_original>
